<compile_context>
chip_gen: v7x
topology: tpu7x:2x2x1
jax: 0.10.0
libtpu: 0.0.40
codegen_flags: <defaults>
</compile_context>

<pallas_src>
import functools

import jax
import jax.numpy as jnp
from jax.experimental import pallas as pl
from jax.experimental.pallas import tpu as pltpu

_LANES = 128
# Persistent-accumulator rows (4 independent f32 vregs of ILP).  Also the row
# alignment of tiles, which covers f32 (8-row) and bf16 (16-row) packing.
_ACC_ROWS = 32


def _loss_kernel(p_ref, t_ref, o_ref, acc_ref, *, inv_denom, valid_rows,
                 steps_per_split, need_mask):
    # p_ref, t_ref : [TM, 128] VMEM input tiles
    # o_ref        : [1, 8, 128] VMEM per-split partial (written on last step)
    # acc_ref      : persistent [32, 128] f32 VMEM accumulator
    s = pl.program_id(0)
    i = pl.program_id(1)

    @pl.when(i == 0)
    def _():
        acc_ref[...] = jnp.zeros_like(acc_ref)

    diff = p_ref[...].astype(jnp.float32) - t_ref[...].astype(jnp.float32)

    if need_mask:
        # Rows at/after `valid_rows` are garbage (partial / clamped OOB tile);
        # zero them before squaring.  Pure VPU work, hidden under the DMA.
        tm = p_ref.shape[0]
        row_in_tile = jax.lax.broadcasted_iota(jnp.int32, (tm, _LANES), 0)
        global_row = (s * steps_per_split + i) * tm + row_in_tile
        diff = jnp.where(global_row < valid_rows, diff, 0.0)

    sq = diff * diff
    # Fold [TM, 128] into 4 independent (8,128) partials -> whole-vreg adds
    # with 4-way ILP, no cross-lane XLU work on the hot path.
    acc_ref[...] += jnp.sum(sq.reshape(-1, _ACC_ROWS, _LANES), axis=0)

    @pl.when(i == pl.num_programs(1) - 1)
    def _():
        folded = jnp.sum(acc_ref[...].reshape(-1, 8, _LANES), axis=0)
        o_ref[...] = (folded * inv_denom).reshape(1, 8, _LANES)


def loss_pallas(predictions, targets, d, batch_size, *, tm=2048, num_splits=1,
                core_parallel=False):
    """Equivalent of Loss.forward(predictions, targets, d, batch_size).

    num_splits=1 (default) is right for v5e/v6e (single TensorCore).  On v7x,
    pass num_splits=2, core_parallel=True to shard the outer grid axis across
    both TensorCores with pltpu.CORE_PARALLEL.
    """
    npts = 2 * d + 1
    # No-op slices/reshapes when the inputs are exactly (batch, 2d+1, 2).
    p = predictions[:batch_size, :npts, :2].reshape(-1)
    t = targets[:batch_size, :npts, :2].reshape(-1)
    n = p.shape[0]

    # Lane-dense [rows, 128] view.  Pad only to the next multiple of 128 (and
    # only when actually needed); both inputs get identical zero padding so
    # padded diffs are exactly 0.
    rows = max(pl.cdiv(n, _LANES), 1)
    pad = rows * _LANES - n
    if pad:
        p = jnp.pad(p, (0, pad))
        t = jnp.pad(t, (0, pad))
    p = p.reshape(rows, _LANES)
    t = t.reshape(rows, _LANES)

    # Tile height: cap at what the data needs, keep it a multiple of _ACC_ROWS.
    tm_eff = min(tm, pl.cdiv(rows, _ACC_ROWS) * _ACC_ROWS)
    tm_eff = max(_ACC_ROWS, (tm_eff // _ACC_ROWS) * _ACC_ROWS)

    blocks = pl.cdiv(rows, tm_eff)
    num_splits = max(1, min(num_splits, blocks))
    steps_per_split = pl.cdiv(blocks, num_splits)
    # Mask is needed whenever the grid covers more rows than exist (ragged last
    # tile and/or split overshoot).  Static Python bool -> no mask ops emitted
    # when the tiling is exact.
    need_mask = steps_per_split * num_splits * tm_eff != rows

    inv_denom = 1.0 / (float(npts) * float(batch_size))
    kernel = functools.partial(
        _loss_kernel,
        inv_denom=inv_denom,
        valid_rows=rows,
        steps_per_split=steps_per_split,
        need_mask=need_mask,
    )

    last_block = blocks - 1

    def in_map(s, i):
        # Clamp so overshoot steps (splits > 1, blocks not divisible) never DMA
        # out of bounds; their contribution is zeroed by the in-kernel mask.
        return (jnp.minimum(s * steps_per_split + i, last_block), 0)

    split_sem = (
        pltpu.CORE_PARALLEL if (core_parallel and num_splits > 1) else "parallel"
    )

    partials = pl.pallas_call(
        kernel,
        out_shape=jax.ShapeDtypeStruct((num_splits, 8, _LANES), jnp.float32),
        grid_spec=pltpu.PrefetchScalarGridSpec(
            num_scalar_prefetch=0,
            grid=(num_splits, steps_per_split),
            in_specs=[
                pl.BlockSpec((tm_eff, _LANES), in_map),
                pl.BlockSpec((tm_eff, _LANES), in_map),
            ],
            out_specs=pl.BlockSpec((1, 8, _LANES), lambda s, i: (s, 0, 0)),
            scratch_shapes=[pltpu.VMEM((_ACC_ROWS, _LANES), jnp.float32)],
        ),
        compiler_params=pltpu.CompilerParams(
            dimension_semantics=(split_sem, "arbitrary"),
        ),
    )(p, t)

    # Sum lane-dense, already-normalized partials (num_splits x 8 x 128 values).
    return jnp.sum(partials)


def loss_reference(predictions, targets, d, batch_size):
    npts = 2 * d + 1
    p = predictions[:batch_size, :npts, :2].astype(jnp.float32)
    t = targets[:batch_size, :npts, :2].astype(jnp.float32)
    diff = p - t
    return jnp.sum(diff * diff) / npts / batch_size


if __name__ == "__main__":
    key = jax.random.PRNGKey(0)
    k1, k2, k3, k4, k5, k6 = jax.random.split(key, 6)

    # Case 1: tiny shapes matching the module's toy usage (ragged, single tile).
    batch_size, d = 2, 3
    npts = 2 * d + 1
    preds = jax.random.normal(k1, (batch_size, npts, 2), jnp.float32)
    targs = jax.random.normal(k2, (batch_size, npts, 2), jnp.float32)
    out1 = jax.block_until_ready(loss_pallas(preds, targs, d, batch_size))
    ref1 = loss_reference(preds, targs, d, batch_size)
    assert jnp.allclose(out1, ref1, rtol=1e-5, atol=1e-6), (out1, ref1)

    # Case 2: forced small tile + 2-way split so the multi-step accumulator,
    # split, clamped-overshoot-block and mask paths are all exercised.
    batch_size2, d2 = 32, 64
    npts2 = 2 * d2 + 1
    preds2 = jax.random.normal(k3, (batch_size2, npts2, 2), jnp.float32)
    targs2 = jax.random.normal(k4, (batch_size2, npts2, 2), jnp.float32)
    out2 = jax.block_until_ready(
        loss_pallas(preds2, targs2, d2, batch_size2, tm=16, num_splits=2)
    )
    ref2 = loss_reference(preds2, targs2, d2, batch_size2)
    assert jnp.allclose(out2, ref2, rtol=1e-4, atol=1e-4), (out2, ref2)

    # Case 3: element count is an exact multiple of 128 -> zero-copy path
    # (no jnp.pad at all), ragged row tile handled purely by the in-kernel mask.
    batch_size3, d3 = 64, 1
    npts3 = 2 * d3 + 1
    preds3 = jax.random.normal(k5, (batch_size3, npts3, 2), jnp.float32)
    targs3 = jax.random.normal(k6, (batch_size3, npts3, 2), jnp.float32)
    out3 = jax.block_until_ready(loss_pallas(preds3, targs3, d3, batch_size3))
    ref3 = loss_reference(preds3, targs3, d3, batch_size3)
    assert jnp.allclose(out3, ref3, rtol=1e-5, atol=1e-6), (out3, ref3)

    print("KERNEL_OK")
</pallas_src>

<mosaic_0001>
module attributes {stable_mosaic.version = 11 : i64} {
  func.func @_loss_kernel(%arg0: i32, %arg1: i32, %arg2: memref<32x128xf32, #tpu.memory_space<vmem>>, %arg3: memref<32x128xf32, #tpu.memory_space<vmem>>, %arg4: memref<1x8x128xf32, #tpu.memory_space<vmem>>, %arg5: memref<32x128xf32, #tpu.memory_space<vmem>>) attributes {dimension_semantics = [#tpu.dimension_semantics<parallel>, #tpu.dimension_semantics<arbitrary>], iteration_bounds = array<i64: 1, 1>, scalar_prefetch = 0 : i64, scratch_operands = 1 : i64, tpu.core_type = #tpu.core_type<tc>, window_params = [{transform_indices = @transform_0, window_bounds = array<i64: 32, 128>}, {transform_indices = @transform_1, window_bounds = array<i64: 32, 128>}, {transform_indices = @transform_2, window_bounds = array<i64: 1, 8, 128>}]} {
    %c0_i32 = arith.constant 0 : i32
    %0 = arith.cmpi eq, %arg1, %c0_i32 : i32
    %1 = arith.extui %0 : i1 to i32
    %c0_i32_0 = arith.constant 0 : i32
    %2 = arith.cmpi ne, %1, %c0_i32_0 : i32
    scf.if %2 {
      %cst_12 = arith.constant 0.000000e+00 : f32
      %25 = vector.broadcast %cst_12 : f32 to vector<32x128xf32>
      %c0_13 = arith.constant 0 : index
      %c0_14 = arith.constant 0 : index
      %26 = vector.load %arg5[%c0_13, %c0_14] : memref<32x128xf32, #tpu.memory_space<vmem>>, vector<32x128xf32>
      tpu.vector_store %arg5[%c0_13, %c0_14], %25 {strides = array<i32>} : memref<32x128xf32, #tpu.memory_space<vmem>>, vector<32x128xf32>,
    } else {
    }
    %c0 = arith.constant 0 : index
    %c0_1 = arith.constant 0 : index
    %3 = vector.load %arg2[%c0, %c0_1] : memref<32x128xf32, #tpu.memory_space<vmem>>, vector<32x128xf32>
    %c0_2 = arith.constant 0 : index
    %c0_3 = arith.constant 0 : index
    %4 = vector.load %arg3[%c0_2, %c0_3] : memref<32x128xf32, #tpu.memory_space<vmem>>, vector<32x128xf32>
    %5 = arith.subf %3, %4 : vector<32x128xf32>
    %6 = tpu.iota {dimensions = array<i32: 0>} : vector<32x128xi32>
    %c1_i32 = arith.constant 1 : i32
    %7 = arith.muli %arg0, %c1_i32 : i32
    %8 = arith.addi %7, %arg1 : i32
    %c32_i32 = arith.constant 32 : i32
    %9 = arith.muli %8, %c32_i32 : i32
    %10 = vector.broadcast %9 : i32 to vector<32x128xi32>
    %11 = arith.addi %10, %6 : vector<32x128xi32>
    %c1_i32_4 = arith.constant 1 : i32
    %12 = vector.broadcast %c1_i32_4 : i32 to vector<32x128xi32>
    %13 = arith.cmpi slt, %11, %12 : vector<32x128xi32>
    %cst = arith.constant 0.000000e+00 : f32
    %14 = vector.broadcast %cst : f32 to vector<32x128xf32>
    %15 = arith.select %13, %5, %14 : vector<32x128xi1>, vector<32x128xf32>
    %16 = arith.mulf %15, %15 : vector<32x128xf32>
    %c0_5 = arith.constant 0 : index
    %c0_6 = arith.constant 0 : index
    %17 = vector.load %arg5[%c0_5, %c0_6] : memref<32x128xf32, #tpu.memory_space<vmem>>, vector<32x128xf32>
    %18 = vector.shape_cast %16 : vector<32x128xf32> to vector<1x32x128xf32>
    %cst_7 = arith.constant dense<0.000000e+00> : vector<32x128xf32>
    %19 = vector.multi_reduction <add>, %18, %cst_7 [0] : vector<1x32x128xf32> to vector<32x128xf32>
    %20 = arith.addf %17, %19 : vector<32x128xf32>
    %c0_8 = arith.constant 0 : index
    %c0_9 = arith.constant 0 : index
    %21 = vector.load %arg5[%c0_8, %c0_9] : memref<32x128xf32, #tpu.memory_space<vmem>>, vector<32x128xf32>
    tpu.vector_store %arg5[%c0_8, %c0_9], %20 {strides = array<i32>} : memref<32x128xf32, #tpu.memory_space<vmem>>, vector<32x128xf32>,
    %c0_i32_10 = arith.constant 0 : i32
    %22 = arith.cmpi eq, %arg1, %c0_i32_10 : i32
    %23 = arith.extui %22 : i1 to i32
    %c0_i32_11 = arith.constant 0 : i32
    %24 = arith.cmpi ne, %23, %c0_i32_11 : i32
    scf.if %24 {
      %c0_12 = arith.constant 0 : index
      %c0_13 = arith.constant 0 : index
      %25 = vector.load %arg5[%c0_12, %c0_13] : memref<32x128xf32, #tpu.memory_space<vmem>>, vector<32x128xf32>
      %26 = vector.shape_cast %25 : vector<32x128xf32> to vector<4x8x128xf32>
      %cst_14 = arith.constant dense<0.000000e+00> : vector<8x128xf32>
      %27 = vector.multi_reduction <add>, %26, %cst_14 [0] : vector<4x8x128xf32> to vector<8x128xf32>
      %cst_15 = arith.constant 0.0714285746 : f32
      %28 = vector.broadcast %cst_15 : f32 to vector<8x128xf32>
      %29 = arith.mulf %27, %28 : vector<8x128xf32>
      %30 = vector.shape_cast %29 : vector<8x128xf32> to vector<1x8x128xf32>
      %c0_16 = arith.constant 0 : index
      %c0_17 = arith.constant 0 : index
      %c0_18 = arith.constant 0 : index
      %31 = vector.load %arg4[%c0_16, %c0_17, %c0_18] : memref<1x8x128xf32, #tpu.memory_space<vmem>>, vector<1x8x128xf32>
      tpu.vector_store %arg4[%c0_16, %c0_17, %c0_18], %30 {strides = array<i32>} : memref<1x8x128xf32, #tpu.memory_space<vmem>>, vector<1x8x128xf32>,
    } else {
    }
    return
  }
  func.func @transform_0(%arg0: i32, %arg1: i32) -> (i32, i32) {
    %c1_i32 = arith.constant 1 : i32
    %0 = arith.muli %arg0, %c1_i32 : i32
    %1 = arith.addi %0, %arg1 : i32
    %c0_i32 = arith.constant 0 : i32
    %2 = arith.minsi %1, %c0_i32 : i32
    %c0_i32_0 = arith.constant 0 : i32
    %c0_i32_1 = arith.constant 0 : i32
    return %2, %c0_i32_0 : i32, i32
  }
  func.func @transform_1(%arg0: i32, %arg1: i32) -> (i32, i32) {
    %c1_i32 = arith.constant 1 : i32
    %0 = arith.muli %arg0, %c1_i32 : i32
    %1 = arith.addi %0, %arg1 : i32
    %c0_i32 = arith.constant 0 : i32
    %2 = arith.minsi %1, %c0_i32 : i32
    %c0_i32_0 = arith.constant 0 : i32
    %c0_i32_1 = arith.constant 0 : i32
    return %2, %c0_i32_0 : i32, i32
  }
  func.func @transform_2(%arg0: i32, %arg1: i32) -> (i32, i32, i32) {
    %c0_i32 = arith.constant 0 : i32
    %c0_i32_0 = arith.constant 0 : i32
    %c0_i32_1 = arith.constant 0 : i32
    return %arg0, %c0_i32, %c0_i32_0 : i32, i32, i32
  }
}

</mosaic_0001>

<llo_original>
// kernel: tpu_custom_call.1
$region0: #{tpu_custom_call.1}
  #allocation0 [shape = 'u32[]', space=smem, size = 0x4, offset = 0x4, fixed_abs, tag = 'smem constant byte address 0x4 - core index']
  #allocation1 [shape = 'u32[144,128]{1,0:T(1,128)}', space=vmem, size = 0x12000, scoped, tag = 'internal scratch']
  #allocation2 [shape = 'f32[32,128]{1,0:T(8,128)}', space=vmem, size = 0x4000, scoped, tag = 'scratch operand']
  %s0 = inlined_call_operand.hbm [shape: f32[1,128], index: 0, kind: input, shape index: {}]
  %s1 = inlined_call_operand.vmem [shape: f32[1,128], index: 1, kind: input, shape index: {}]
  %s2 = inlined_call_operand.hbm [shape: f32[1,8,128], index: 2, kind: output, shape index: {}]
  %s3 = sld [smem:[#allocation0]]
  $region30: #{tpu_custom_call.1} parent=0
    _
  %s5 = ssub.s32 1, %s3
  %s6 = scalar_select 0, %s5, %s3
  $region1: #{tpu_custom_call.1} parent=0
    #allocation3 [shape = 'u8[16384]{0}', space=vmem, size = 0x4000, scoped, tag = 'input window, operand 0, single buffered']
    #allocation4 [shape = 's32[1]{0}', space=sflag, size = 0x4, scoped, tag = 'scoped memory for tpu_custom_call.1']
    #allocation5 [shape = 's32[1]{0}', space=sflag, size = 0x4, scoped, tag = 'scoped memory for tpu_custom_call.1']
    #allocation6 [shape = 'u8[4096]{0}', space=vmem, size = 0x1000, scoped, tag = 'output window, operand 0, single buffered']
    %7 = vsyncpa [#allocation4], 0
    %8 = vsyncpa [#allocation5], 0
    // Predicated region
    $region2: #{tpu_custom_call.1} parent=1 // pred_check
      _
    $region3: #{tpu_custom_call.1} parent=1 // pred_check_branch
      %10 = sbr.rel (0) target = $region5
    $region4: #{tpu_custom_call.1} parent=1 // pred_region
      %s11 = sadd.s32 0, 0
      %p12 = scmp.lt.s32.totalorder %s11, 0
      %s13 = scalar_select %p12, %s11, 0
      %s14 = smul.u32 32, %s13
      %s15 = ssub.s32 1, %s14
      %s16 = smul.u32 16, %s15
      %s18 = ssub.s32 512, %s16
      %19 = vsyncadd [#allocation4], %s18
      %p20 = scmp.ne.s32.totalorder 0, %s16
      %s21 = smul.addr %s14, 16
      %s22 = scalar_lea.hbm %s0, %s21
      %s23 = sshll.u32 [#allocation3], 4
      %s24 = int_to_ptr.vmem [resolvable:$true] %s23
      %s25 = sshll.u32 %s15, 4
      %29 = dma.hbm_to_vmem [thread:$0]  (%p20), %s22, %s25, %s24, [#allocation4], 16, 16, 1
    $region5: #{tpu_custom_call.1} parent=1 // pred_fallthru
      _
    // Predicated region
    $region6: #{tpu_custom_call.1} parent=1 // pred_check
      _
    $region7: #{tpu_custom_call.1} parent=1 // pred_check_branch
      %31 = sbr.rel (0) target = $region9
    $region8: #{tpu_custom_call.1} parent=1 // pred_region
      %s32 = sadd.s32 0, 0
      %p33 = scmp.lt.s32.totalorder %s32, 0
      %s34 = scalar_select %p33, %s32, 0
      %s35 = smul.u32 32, %s34
      %s36 = ssub.s32 1, %s35
      %s37 = smul.u32 16, %s36
      %p38 = scmp.lt.s32.totalorder %s35, 0
      %s39 = scalar_select %p38, %s35, 0
      %s40 = scalar_lea.vmem %s1, %s39
      %s41 = sadd.s32 0, 0
      %p42 = scmp.lt.s32.totalorder %s41, 0
      %s43 = scalar_select %p42, %s41, 0
      %s44 = smul.u32 32, %s43
      %s45 = ssub.s32 1, %s44
      %s46 = smul.u32 16, %s45
    $region9: #{tpu_custom_call.1} parent=1 // pred_fallthru
      _
    // Predicated region
    $region10: #{tpu_custom_call.1} parent=1 // pred_check
      _
    $region11: #{tpu_custom_call.1} parent=1 // pred_check_branch
      %48 = sbr.rel (0) target = $region13
    $region12: #{tpu_custom_call.1} parent=1 // pred_region
      %49 = dma.done [#allocation4], 512
    $region13: #{tpu_custom_call.1} parent=1 // pred_fallthru
      _
    %s50 = sadd.s32 0, 0
    %p51 = scmp.lt.s32.totalorder %s50, 0
    %s52 = scalar_select %p51, %s50, 0
    %s53 = smul.u32 32, %s52
    %s54 = ssub.s32 1, %s53
    %s55 = smul.u32 16, %s54
    %p56 = scmp.lt.s32.totalorder %s53, 0
    %s57 = scalar_select %p56, %s53, 0
    %s58 = scalar_lea.vmem %s1, %s57
    %s59 = sadd.s32 0, 0
    %p60 = scmp.lt.s32.totalorder %s59, 0
    %s61 = scalar_select %p60, %s59, 0
    %s62 = smul.u32 32, %s61
    %s63 = ssub.s32 1, %s62
    %s64 = smul.u32 16, %s63
    %s65 = sadd.s32 0, 0
    %p66 = scmp.lt.s32.totalorder %s65, 0
    %s67 = scalar_select %p66, %s65, 0
    %s68 = smul.u32 32, %s67
    %s69 = ssub.s32 1, %s68
    %s70 = smul.u32 16, %s69
    %p71 = scmp.lt.s32.totalorder %s68, 0
    %s72 = scalar_select %p71, %s68, 0
    %s73 = scalar_lea.vmem %s1, %s72
    %s74 = sadd.s32 0, 0
    %p75 = scmp.lt.s32.totalorder %s74, 0
    %s76 = scalar_select %p75, %s74, 0
    %s77 = smul.u32 32, %s76
    %s78 = ssub.s32 1, %s77
    %s79 = smul.u32 16, %s78
    %p80 = scmp.eq.s32.totalorder 0, 0
    // Predicated region
    $region14: #{tpu_custom_call.1} parent=1 // pred_check
      %p81 = pneg %p80
    $region15: #{tpu_custom_call.1} parent=1 // pred_check_branch
      %83 = sbr.rel (%p81) target = $region17
    $region16: #{tpu_custom_call.1} parent=1 // pred_region
      %84 = vst [vmem:[#allocation2] sm:$0xff] 0.0
      %85 = vst [vmem:[#allocation2 + $0x8] sm:$0xff] 0.0
      %86 = vst [vmem:[#allocation2 + $0x10] sm:$0xff] 0.0
      %87 = vst [vmem:[#allocation2 + $0x18] sm:$0xff] 0.0
    $region17: #{tpu_custom_call.1} parent=1 // pred_fallthru
      _
    %v88 = vld [vmem:[#allocation3] sm:$0xff]
    %v89 = vld [vmem:[#allocation3 + $0x8] sm:$0xff]
    %v90 = vld [vmem:[#allocation3 + $0x10] sm:$0xff]
    %v91 = vld [vmem:[#allocation3 + $0x18] sm:$0xff]
    %v92 = vld [vmem:[%s73] sm:$0xff]
    %v93 = vld [vmem:[%s73 + $0x8] sm:$0xff]
    %v94 = vld [vmem:[%s73 + $0x10] sm:$0xff]
    %v95 = vld [vmem:[%s73 + $0x18] sm:$0xff]
    %v96 = vsub.f32 %v88, %v92
    %v97 = vsub.f32 %v89, %v93
    %v98 = vsub.f32 %v90, %v94
    %v99 = vsub.f32 %v91, %v95
    %v100 = vlaneseq
    %v101 = vshrl.u32 %v100, 7
    %v102 = vadd.s32 %v101, 8
    %v103 = vadd.s32 %v101, 16
    %v104 = vadd.s32 %v101, 24
    %s105 = sadd.s32 0, 0
    %s106 = smul.u32 %s105, 32
    %v107 = vstv %s106
    %v108 = vadd.s32 %v107, %v101
    %v109 = vadd.s32 %v107, %v102
    %v110 = vadd.s32 %v107, %v103
    %v111 = vadd.s32 %v107, %v104
    %vm112 = vcmp.lt.s32.totalorder %v108, 1
    %vm113 = vcmp.lt.s32.totalorder %v109, 1
    %vm114 = vcmp.lt.s32.totalorder %v110, 1
    %vm115 = vcmp.lt.s32.totalorder %v111, 1
    %v116 = vsel %vm112, %v96, 0.0
    %v117 = vsel %vm113, %v97, 0.0
    %v118 = vsel %vm114, %v98, 0.0
    %v119 = vsel %vm115, %v99, 0.0
    %v120 = vmul.f32 %v116, %v116
    %v121 = vmul.f32 %v117, %v117
    %v122 = vmul.f32 %v118, %v118
    %v123 = vmul.f32 %v119, %v119
    %v124 = vld [vmem:[#allocation2] sm:$0xff]
    %v125 = vld [vmem:[#allocation2 + $0x8] sm:$0xff]
    %v126 = vld [vmem:[#allocation2 + $0x10] sm:$0xff]
    %v127 = vld [vmem:[#allocation2 + $0x18] sm:$0xff]
    %v128 = vadd.f32 %v120, 0.0
    %v129 = vadd.f32 %v121, 0.0
    %v130 = vadd.f32 %v122, 0.0
    %v131 = vadd.f32 %v123, 0.0
    %v132 = vadd.f32 %v124, %v128
    %v133 = vadd.f32 %v125, %v129
    %v134 = vadd.f32 %v126, %v130
    %v135 = vadd.f32 %v127, %v131
    %136 = vst [vmem:[#allocation2] sm:$0xff] %v132
    %137 = vst [vmem:[#allocation2 + $0x8] sm:$0xff] %v133
    %138 = vst [vmem:[#allocation2 + $0x10] sm:$0xff] %v134
    %139 = vst [vmem:[#allocation2 + $0x18] sm:$0xff] %v135
    // Predicated region
    $region18: #{tpu_custom_call.1} parent=1 // pred_check
      %p140 = pneg %p80
    $region19: #{tpu_custom_call.1} parent=1 // pred_check_branch
      %142 = sbr.rel (%p140) target = $region21
    $region20: #{tpu_custom_call.1} parent=1 // pred_region
      %v143 = vld [vmem:[#allocation2] sm:$0xff]
      %v144 = vld [vmem:[#allocation2 + $0x8] sm:$0xff]
      %v145 = vld [vmem:[#allocation2 + $0x10] sm:$0xff]
      %v146 = vld [vmem:[#allocation2 + $0x18] sm:$0xff]
      %v147 = vadd.f32 %v143, %v144
      %v148 = vadd.f32 %v147, %v145
      %v149 = vadd.f32 %v148, %v146
      %v150 = vmul.f32 %v149, 0.071428575
      %151 = vst [vmem:[#allocation6] sm:$0xff] %v150
    $region21: #{tpu_custom_call.1} parent=1 // pred_fallthru
      _
    // Predicated region
    $region22: #{tpu_custom_call.1} parent=1 // pred_check
      _
    $region23: #{tpu_custom_call.1} parent=1 // pred_check_branch
      %153 = sbr.rel (0) target = $region25
    $region24: #{tpu_custom_call.1} parent=1 // pred_region
      %s155 = ssub.s32 128, 128
      %156 = vsyncadd [#allocation5], %s155
      %s158 = sshll.u32 [#allocation6], 4
      %s159 = int_to_ptr.vmem [resolvable:$true] %s158
      %161 = dma.vmem_to_hbm [thread:$0]  %s159, 128, %s2, [#allocation5]
    $region25: #{tpu_custom_call.1} parent=1 // pred_fallthru
      _
    // Predicated region
    $region26: #{tpu_custom_call.1} parent=1 // pred_check
      _
    $region27: #{tpu_custom_call.1} parent=1 // pred_check_branch
      %163 = sbr.rel (0) target = $region29
    $region28: #{tpu_custom_call.1} parent=1 // pred_region
      %164 = dma.done [#allocation5], 128
    $region29: #{tpu_custom_call.1} parent=1 // pred_fallthru
      _
    %165 = vsyncpa [#allocation4], 1
    %166 = vsyncpa [#allocation5], 1

</llo_original>
